<compile_context>
chip_gen: v7x
topology: tpu7x:2x2x1
jax: 0.10.0
libtpu: 0.0.40
codegen_flags: <defaults>
</compile_context>

<pallas_src>
import functools
from math import log2, floor

import jax
import jax.numpy as jnp
from jax.experimental import pallas as pl
from jax.experimental.pallas import tpu as pltpu


def _get_slopes(heads):
    """Deterministic ALiBi slopes, identical to the PyTorch module."""
    def get_slopes_power_of_2(n):
        start = 2 ** (-2 ** (-(log2(n) - 3)))
        ratio = start
        return [start * ratio ** i for i in range(n)]

    if log2(heads).is_integer():
        return get_slopes_power_of_2(heads)
    closest = 2 ** floor(log2(heads))
    return (get_slopes_power_of_2(closest)
            + get_slopes_power_of_2(2 * closest)[0::2][:heads - closest])


def _round_up(x, m):
    return (x + m - 1) // m * m


def _pick_row_tile(n_pad, heads, target_bytes=4 << 20):
    """Largest row-tile (multiple of 8, divides n_pad) with <= ~4 MiB/block."""
    for tm in (2048, 1024, 512, 256, 128, 64, 32, 16, 8):
        if n_pad % tm == 0 and heads * tm * n_pad * 4 <= target_bytes:
            return tm
    return 8


def _alibi_kernel(neg_slopes_ref, row_ref, col_ref, out_ref, *, heads, clip):
    # neg_slopes_ref: (heads,) f32 in SMEM, pre-negated & pre-scaled
    # row_ref: (1, Np)   residx along lanes  -> the "j" axis
    # col_ref: (TM, 1)   residx for this row tile -> the "i" axis
    # out_ref: (1, heads, TM, Np) f32 in VMEM
    rel = row_ref[...] - col_ref[...]          # (TM, Np) broadcast subtract
    bias = jnp.abs(rel)
    if clip:
        bias = jnp.minimum(bias, 32.0)
    # Head-invariant bias computed once; one lane-dense (TM, Np) store per head.
    for h in range(heads):
        out_ref[0, h, :, :] = bias * neg_slopes_ref[h]


def alibi_positional_bias(residx, heads, slope_factor, clip=False):
    """residx: (N,) int or float array. Returns (1, heads, N, N) float32."""
    N = residx.shape[0]
    n_pad = _round_up(max(N, 1), 128)          # lane-dense last dim
    tm = _pick_row_tile(n_pad, heads)

    # Fold -(slope * slope_factor) on the host (free, removes per-step work).
    neg_slopes = jnp.asarray(
        [-s * float(slope_factor) for s in _get_slopes(heads)], dtype=jnp.float32)

    # NOTE: residx is cast to f32; exact as long as |residx[j]-residx[i]| < 2**24
    # (always true for protein residue indices).
    r = jnp.pad(residx.astype(jnp.float32), (0, n_pad - N))
    row = r.reshape(1, n_pad)                  # "j" axis on lanes
    col = r.reshape(n_pad, 1)                  # "i" axis on sublanes (transpose hoisted here)

    kernel = functools.partial(_alibi_kernel, heads=int(heads), clip=bool(clip))

    out_pad = pl.pallas_call(
        kernel,
        out_shape=jax.ShapeDtypeStruct((1, heads, n_pad, n_pad), jnp.float32),
        grid=(n_pad // tm,),
        in_specs=[
            pl.BlockSpec(memory_space=pltpu.SMEM),           # neg_slopes, whole array
            pl.BlockSpec((1, n_pad), lambda i: (0, 0)),      # row residx, same tile each step
            pl.BlockSpec((tm, 1), lambda i: (i, 0)),         # col residx for this row tile
        ],
        out_specs=pl.BlockSpec((1, heads, tm, n_pad), lambda i: (0, 0, i, 0)),
        compiler_params=pltpu.CompilerParams(
            dimension_semantics=("parallel",)),
    )(neg_slopes, row, col)

    if n_pad == N:
        return out_pad
    return out_pad[:, :, :N, :N]


def _reference(residx, heads, slope_factor, clip=False):
    """Pure-JAX reference mirroring the PyTorch forward."""
    slopes = jnp.asarray(_get_slopes(heads), dtype=jnp.float32).reshape(1, heads, 1, 1)
    r = residx.astype(jnp.float32)
    rel = r[None, :] - r[:, None]
    bias = jnp.abs(rel)
    if clip:
        bias = jnp.minimum(bias, 32.0)
    bias = jnp.broadcast_to(bias[None, None], (1, heads) + rel.shape)
    return bias * -(slopes * slope_factor)


if __name__ == "__main__":
    heads = 4
    slope_factor = 0.5

    key = jax.random.PRNGKey(0)

    # Case 1: tiny sequence (single grid step, padded to 128 lanes).
    N1 = 16
    residx1 = jax.random.randint(key, (N1,), 0, 100, dtype=jnp.int32)
    out1 = jax.block_until_ready(alibi_positional_bias(residx1, heads, slope_factor, clip=False))
    ref1 = _reference(residx1, heads, slope_factor, clip=False)
    assert out1.shape == (1, heads, N1, N1) and out1.dtype == jnp.float32
    assert jnp.allclose(out1, ref1, atol=1e-6, rtol=1e-6)

    # Case 2: non-multiple-of-128 length with clipping (exercises padding + clip path).
    N2 = 200
    residx2 = jnp.arange(N2, dtype=jnp.int32)
    out2 = jax.block_until_ready(alibi_positional_bias(residx2, heads, slope_factor, clip=True))
    ref2 = _reference(residx2, heads, slope_factor, clip=True)
    assert out2.shape == (1, heads, N2, N2) and out2.dtype == jnp.float32
    assert jnp.allclose(out2, ref2, atol=1e-6, rtol=1e-6)

    print("KERNEL_OK")
</pallas_src>

<mosaic_0001>
module attributes {stable_mosaic.version = 11 : i64} {
  func.func @_alibi_kernel(%arg0: i32, %arg1: memref<4xf32, #tpu.memory_space<smem>>, %arg2: memref<1x128xf32, #tpu.memory_space<vmem>>, %arg3: memref<128x1xf32, #tpu.memory_space<vmem>>, %arg4: memref<1x4x128x128xf32, #tpu.memory_space<vmem>>) attributes {dimension_semantics = [#tpu.dimension_semantics<parallel>], iteration_bounds = array<i64: 1>, scalar_prefetch = 0 : i64, scratch_operands = 0 : i64, tpu.core_type = #tpu.core_type<tc>, window_params = [{transform_indices = @transform_0, window_bounds = array<i64: 4>}, {pipeline_mode = #tpu.pipeline_mode<synchronous>, transform_indices = @transform_1, window_bounds = array<i64: 1, 128>}, {transform_indices = @transform_2, window_bounds = array<i64: 128, 1>}, {transform_indices = @transform_3, window_bounds = array<i64: 1, 4, 128, 128>}]} {
    %c0 = arith.constant 0 : index
    %c0_0 = arith.constant 0 : index
    %0 = vector.load %arg2[%c0, %c0_0] : memref<1x128xf32, #tpu.memory_space<vmem>>, vector<1x128xf32>
    %c0_1 = arith.constant 0 : index
    %c0_2 = arith.constant 0 : index
    %1 = vector.load %arg3[%c0_1, %c0_2] : memref<128x1xf32, #tpu.memory_space<vmem>>, vector<128x1xf32>
    %2 = vector.broadcast %0 : vector<1x128xf32> to vector<128x128xf32>
    %3 = vector.broadcast %1 : vector<128x1xf32> to vector<128x128xf32>
    %4 = arith.subf %2, %3 : vector<128x128xf32>
    %5 = math.absf %4 : vector<128x128xf32>
    %c0_3 = arith.constant 0 : index
    %6 = memref.load %arg1[%c0_3] : memref<4xf32, #tpu.memory_space<smem>>
    %7 = vector.broadcast %6 : f32 to vector<128x128xf32>
    %8 = arith.mulf %5, %7 : vector<128x128xf32>
    %c0_4 = arith.constant 0 : index
    %c0_5 = arith.constant 0 : index
    %c0_6 = arith.constant 0 : index
    %c0_7 = arith.constant 0 : index
    %9 = vector.load %arg4[%c0_4, %c0_5, %c0_6, %c0_7] : memref<1x4x128x128xf32, #tpu.memory_space<vmem>>, vector<1x1x128x128xf32>
    %10 = vector.shape_cast %9 : vector<1x1x128x128xf32> to vector<128x128xf32>
    %11 = vector.shape_cast %8 : vector<128x128xf32> to vector<1x1x128x128xf32>
    tpu.vector_store %arg4[%c0_4, %c0_5, %c0_6, %c0_7], %11 {strides = array<i32>} : memref<1x4x128x128xf32, #tpu.memory_space<vmem>>, vector<1x1x128x128xf32>,
    %c1 = arith.constant 1 : index
    %12 = memref.load %arg1[%c1] : memref<4xf32, #tpu.memory_space<smem>>
    %13 = vector.broadcast %12 : f32 to vector<128x128xf32>
    %14 = arith.mulf %5, %13 : vector<128x128xf32>
    %c0_8 = arith.constant 0 : index
    %c1_9 = arith.constant 1 : index
    %c0_10 = arith.constant 0 : index
    %c0_11 = arith.constant 0 : index
    %15 = vector.load %arg4[%c0_8, %c1_9, %c0_10, %c0_11] : memref<1x4x128x128xf32, #tpu.memory_space<vmem>>, vector<1x1x128x128xf32>
    %16 = vector.shape_cast %15 : vector<1x1x128x128xf32> to vector<128x128xf32>
    %17 = vector.shape_cast %14 : vector<128x128xf32> to vector<1x1x128x128xf32>
    tpu.vector_store %arg4[%c0_8, %c1_9, %c0_10, %c0_11], %17 {strides = array<i32>} : memref<1x4x128x128xf32, #tpu.memory_space<vmem>>, vector<1x1x128x128xf32>,
    %c2 = arith.constant 2 : index
    %18 = memref.load %arg1[%c2] : memref<4xf32, #tpu.memory_space<smem>>
    %19 = vector.broadcast %18 : f32 to vector<128x128xf32>
    %20 = arith.mulf %5, %19 : vector<128x128xf32>
    %c0_12 = arith.constant 0 : index
    %c2_13 = arith.constant 2 : index
    %c0_14 = arith.constant 0 : index
    %c0_15 = arith.constant 0 : index
    %21 = vector.load %arg4[%c0_12, %c2_13, %c0_14, %c0_15] : memref<1x4x128x128xf32, #tpu.memory_space<vmem>>, vector<1x1x128x128xf32>
    %22 = vector.shape_cast %21 : vector<1x1x128x128xf32> to vector<128x128xf32>
    %23 = vector.shape_cast %20 : vector<128x128xf32> to vector<1x1x128x128xf32>
    tpu.vector_store %arg4[%c0_12, %c2_13, %c0_14, %c0_15], %23 {strides = array<i32>} : memref<1x4x128x128xf32, #tpu.memory_space<vmem>>, vector<1x1x128x128xf32>,
    %c3 = arith.constant 3 : index
    %24 = memref.load %arg1[%c3] : memref<4xf32, #tpu.memory_space<smem>>
    %25 = vector.broadcast %24 : f32 to vector<128x128xf32>
    %26 = arith.mulf %5, %25 : vector<128x128xf32>
    %c0_16 = arith.constant 0 : index
    %c3_17 = arith.constant 3 : index
    %c0_18 = arith.constant 0 : index
    %c0_19 = arith.constant 0 : index
    %27 = vector.load %arg4[%c0_16, %c3_17, %c0_18, %c0_19] : memref<1x4x128x128xf32, #tpu.memory_space<vmem>>, vector<1x1x128x128xf32>
    %28 = vector.shape_cast %27 : vector<1x1x128x128xf32> to vector<128x128xf32>
    %29 = vector.shape_cast %26 : vector<128x128xf32> to vector<1x1x128x128xf32>
    tpu.vector_store %arg4[%c0_16, %c3_17, %c0_18, %c0_19], %29 {strides = array<i32>} : memref<1x4x128x128xf32, #tpu.memory_space<vmem>>, vector<1x1x128x128xf32>,
    return
  }
  func.func @transform_0(%arg0: i32) -> i32 {
    %c0_i32 = arith.constant 0 : i32
    %c0_i32_0 = arith.constant 0 : i32
    return %c0_i32 : i32
  }
  func.func @transform_1(%arg0: i32) -> (i32, i32) {
    %c0_i32 = arith.constant 0 : i32
    %c0_i32_0 = arith.constant 0 : i32
    %c0_i32_1 = arith.constant 0 : i32
    return %c0_i32, %c0_i32_0 : i32, i32
  }
  func.func @transform_2(%arg0: i32) -> (i32, i32) {
    %c0_i32 = arith.constant 0 : i32
    %c0_i32_0 = arith.constant 0 : i32
    return %arg0, %c0_i32 : i32, i32
  }
  func.func @transform_3(%arg0: i32) -> (i32, i32, i32, i32) {
    %c0_i32 = arith.constant 0 : i32
    %c0_i32_0 = arith.constant 0 : i32
    %c0_i32_1 = arith.constant 0 : i32
    %c0_i32_2 = arith.constant 0 : i32
    return %c0_i32, %c0_i32_0, %arg0, %c0_i32_1 : i32, i32, i32, i32
  }
}

</mosaic_0001>

<llo_original>
// kernel: tpu_custom_call.1
$region0: #{tpu_custom_call.1}
  #allocation0 [shape = 'u32[]', space=smem, size = 0x4, offset = 0x4, fixed_abs, tag = 'smem constant byte address 0x4 - core index']
  #allocation1 [shape = 'u32[144,128]{1,0:T(1,128)}', space=vmem, size = 0x12000, scoped, tag = 'internal scratch']
  %s0 = inlined_call_operand.vmem [shape: f32[4], index: 0, kind: input, shape index: {}]
  %s1 = inlined_call_operand.vmem [shape: f32[1,128], index: 1, kind: input, shape index: {}]
  %s2 = inlined_call_operand.vmem [shape: f32[128,1], index: 2, kind: input, shape index: {}]
  %s3 = inlined_call_operand.hbm [shape: f32[1,4,128,128], index: 3, kind: output, shape index: {}]
  %s4 = sld [smem:[#allocation0]]
  $region26: #{tpu_custom_call.1} parent=0
    _
  %s6 = ssub.s32 1, %s4
  %s7 = scalar_select 0, %s6, %s4
  $region1: #{tpu_custom_call.1} parent=0
    #allocation2 [shape = 'u8[512]{0}', space=smem, size = 0x200, scoped, tag = 'input window, operand 0, single buffered']
    #allocation3 [shape = 's32[1]{0}', space=sflag, size = 0x4, scoped, tag = 'scoped memory for tpu_custom_call.1']
    #allocation4 [shape = 's32[1]{0}', space=sflag, size = 0x4, scoped, tag = 'scoped memory for tpu_custom_call.1']
    #allocation5 [shape = 'u8[262144]{0}', space=vmem, size = 0x40000, scoped, tag = 'output window, operand 0, single buffered']
    %8 = vsyncpa [#allocation4], 0
    %9 = vsyncpa [#allocation3], 0
    // Predicated region
    $region2: #{tpu_custom_call.1} parent=1 // pred_check
      _
    $region3: #{tpu_custom_call.1} parent=1 // pred_check_branch
      %11 = sbr.rel (0) target = $region5
    $region4: #{tpu_custom_call.1} parent=1 // pred_region
      %s13 = ssub.s32 16, 16
      %14 = vsyncadd [#allocation4], %s13
      %s16 = sshll.u32 %s0, 4
      %s17 = int_to_ptr.vmem [resolvable:$true] %s16
      %19 = dma.vmem_to_smem %s17, 16, [#allocation2], [#allocation4]
    $region5: #{tpu_custom_call.1} parent=1 // pred_fallthru
      _
    // Predicated region
    $region6: #{tpu_custom_call.1} parent=1 // pred_check
      _
    $region7: #{tpu_custom_call.1} parent=1 // pred_check_branch
      %21 = sbr.rel (0) target = $region9
    $region8: #{tpu_custom_call.1} parent=1 // pred_region
      _
    $region9: #{tpu_custom_call.1} parent=1 // pred_fallthru
      _
    // Predicated region
    $region10: #{tpu_custom_call.1} parent=1 // pred_check
      _
    $region11: #{tpu_custom_call.1} parent=1 // pred_check_branch
      %23 = sbr.rel (0) target = $region13
    $region12: #{tpu_custom_call.1} parent=1 // pred_region
      _
    $region13: #{tpu_custom_call.1} parent=1 // pred_fallthru
      _
    // Predicated region
    $region14: #{tpu_custom_call.1} parent=1 // pred_check
      _
    $region15: #{tpu_custom_call.1} parent=1 // pred_check_branch
      %25 = sbr.rel (0) target = $region17
    $region16: #{tpu_custom_call.1} parent=1 // pred_region
      %26 = dma.done [#allocation4], 16
    $region17: #{tpu_custom_call.1} parent=1 // pred_fallthru
      _
    %27 = sfence
    %v28 = vld [vmem:[%s1] sm:$0x1]
    %v29 = vld [vmem:[%s2] sm:$0xff]
    %v30 = vld [vmem:[%s2 + $0x8] sm:$0xff]
    %v31 = vld [vmem:[%s2 + $0x10] sm:$0xff]
    %v32 = vld [vmem:[%s2 + $0x18] sm:$0xff]
    %v33 = vld [vmem:[%s2 + $0x20] sm:$0xff]
    %v34 = vld [vmem:[%s2 + $0x28] sm:$0xff]
    %v35 = vld [vmem:[%s2 + $0x30] sm:$0xff]
    %v36 = vld [vmem:[%s2 + $0x38] sm:$0xff]
    %v37 = vld [vmem:[%s2 + $0x40] sm:$0xff]
    %v38 = vld [vmem:[%s2 + $0x48] sm:$0xff]
    %v39 = vld [vmem:[%s2 + $0x50] sm:$0xff]
    %v40 = vld [vmem:[%s2 + $0x58] sm:$0xff]
    %v41 = vld [vmem:[%s2 + $0x60] sm:$0xff]
    %v42 = vld [vmem:[%s2 + $0x68] sm:$0xff]
    %v43 = vld [vmem:[%s2 + $0x70] sm:$0xff]
    %v44 = vld [vmem:[%s2 + $0x78] sm:$0xff]
    %v46 = vlaneseq
    %v47 = vshrl.u32 %v46, 7
    %v48 = vsub.s32 0, %v47
    %v49 = vrot.slane %v28, %v48
    %52 = vset.pattern.permute.xlu0 0
    %53 = vperm.xlu0 %52, %v29
    %v54 = vpop.permute.xlu0 %53
    %57 = vset.pattern.permute.xlu0 0
    %58 = vperm.xlu0 %57, %v30
    %v59 = vpop.permute.xlu0 %58
    %62 = vset.pattern.permute.xlu0 0
    %63 = vperm.xlu0 %62, %v31
    %v64 = vpop.permute.xlu0 %63
    %67 = vset.pattern.permute.xlu0 0
    %68 = vperm.xlu0 %67, %v32
    %v69 = vpop.permute.xlu0 %68
    %72 = vset.pattern.permute.xlu0 0
    %73 = vperm.xlu0 %72, %v33
    %v74 = vpop.permute.xlu0 %73
    %77 = vset.pattern.permute.xlu0 0
    %78 = vperm.xlu0 %77, %v34
    %v79 = vpop.permute.xlu0 %78
    %82 = vset.pattern.permute.xlu0 0
    %83 = vperm.xlu0 %82, %v35
    %v84 = vpop.permute.xlu0 %83
    %87 = vset.pattern.permute.xlu0 0
    %88 = vperm.xlu0 %87, %v36
    %v89 = vpop.permute.xlu0 %88
    %92 = vset.pattern.permute.xlu0 0
    %93 = vperm.xlu0 %92, %v37
    %v94 = vpop.permute.xlu0 %93
    %97 = vset.pattern.permute.xlu0 0
    %98 = vperm.xlu0 %97, %v38
    %v99 = vpop.permute.xlu0 %98
    %102 = vset.pattern.permute.xlu0 0
    %103 = vperm.xlu0 %102, %v39
    %v104 = vpop.permute.xlu0 %103
    %107 = vset.pattern.permute.xlu0 0
    %108 = vperm.xlu0 %107, %v40
    %v109 = vpop.permute.xlu0 %108
    %112 = vset.pattern.permute.xlu0 0
    %113 = vperm.xlu0 %112, %v41
    %v114 = vpop.permute.xlu0 %113
    %117 = vset.pattern.permute.xlu0 0
    %118 = vperm.xlu0 %117, %v42
    %v119 = vpop.permute.xlu0 %118
    %122 = vset.pattern.permute.xlu0 0
    %123 = vperm.xlu0 %122, %v43
    %v124 = vpop.permute.xlu0 %123
    %127 = vset.pattern.permute.xlu0 0
    %128 = vperm.xlu0 %127, %v44
    %v129 = vpop.permute.xlu0 %128
    %v131 = vsub.f32 %v49, %v54
    %v132 = vsub.f32 %v49, %v59
    %v133 = vsub.f32 %v49, %v64
    %v134 = vsub.f32 %v49, %v69
    %v135 = vsub.f32 %v49, %v74
    %v136 = vsub.f32 %v49, %v79
    %v137 = vsub.f32 %v49, %v84
    %v138 = vsub.f32 %v49, %v89
    %v139 = vsub.f32 %v49, %v94
    %v140 = vsub.f32 %v49, %v99
    %v141 = vsub.f32 %v49, %v104
    %v142 = vsub.f32 %v49, %v109
    %v143 = vsub.f32 %v49, %v114
    %v144 = vsub.f32 %v49, %v119
    %v145 = vsub.f32 %v49, %v124
    %v146 = vsub.f32 %v49, %v129
    %v147 = vand.u32 2147483647, %v131
    %v148 = vand.u32 2147483647, %v132
    %v149 = vand.u32 2147483647, %v133
    %v150 = vand.u32 2147483647, %v134
    %v151 = vand.u32 2147483647, %v135
    %v152 = vand.u32 2147483647, %v136
    %v153 = vand.u32 2147483647, %v137
    %v154 = vand.u32 2147483647, %v138
    %v155 = vand.u32 2147483647, %v139
    %v156 = vand.u32 2147483647, %v140
    %v157 = vand.u32 2147483647, %v141
    %v158 = vand.u32 2147483647, %v142
    %v159 = vand.u32 2147483647, %v143
    %v160 = vand.u32 2147483647, %v144
    %v161 = vand.u32 2147483647, %v145
    %v162 = vand.u32 2147483647, %v146
    %s163 = sld [smem:[#allocation2]]
    %v164 = vstv %s163
    %v165 = vmul.f32 %v147, %v164
    %v166 = vmul.f32 %v148, %v164
    %v167 = vmul.f32 %v149, %v164
    %v168 = vmul.f32 %v150, %v164
    %v169 = vmul.f32 %v151, %v164
    %v170 = vmul.f32 %v152, %v164
    %v171 = vmul.f32 %v153, %v164
    %v172 = vmul.f32 %v154, %v164
    %v173 = vmul.f32 %v155, %v164
    %v174 = vmul.f32 %v156, %v164
    %v175 = vmul.f32 %v157, %v164
    %v176 = vmul.f32 %v158, %v164
    %v177 = vmul.f32 %v159, %v164
    %v178 = vmul.f32 %v160, %v164
    %v179 = vmul.f32 %v161, %v164
    %v180 = vmul.f32 %v162, %v164
    %181 = vst [vmem:[#allocation5] sm:$0xff] %v165
    %182 = vst [vmem:[#allocation5 + $0x8] sm:$0xff] %v166
    %183 = vst [vmem:[#allocation5 + $0x10] sm:$0xff] %v167
    %184 = vst [vmem:[#allocation5 + $0x18] sm:$0xff] %v168
    %185 = vst [vmem:[#allocation5 + $0x20] sm:$0xff] %v169
    %186 = vst [vmem:[#allocation5 + $0x28] sm:$0xff] %v170
    %187 = vst [vmem:[#allocation5 + $0x30] sm:$0xff] %v171
    %188 = vst [vmem:[#allocation5 + $0x38] sm:$0xff] %v172
    %189 = vst [vmem:[#allocation5 + $0x40] sm:$0xff] %v173
    %190 = vst [vmem:[#allocation5 + $0x48] sm:$0xff] %v174
    %191 = vst [vmem:[#allocation5 + $0x50] sm:$0xff] %v175
    %192 = vst [vmem:[#allocation5 + $0x58] sm:$0xff] %v176
    %193 = vst [vmem:[#allocation5 + $0x60] sm:$0xff] %v177
    %194 = vst [vmem:[#allocation5 + $0x68] sm:$0xff] %v178
    %195 = vst [vmem:[#allocation5 + $0x70] sm:$0xff] %v179
    %196 = vst [vmem:[#allocation5 + $0x78] sm:$0xff] %v180
    %s197 = sld [smem:[#allocation2 + $0x1]]
    %v198 = vstv %s197
    %v199 = vmul.f32 %v147, %v198
    %v200 = vmul.f32 %v148, %v198
    %v201 = vmul.f32 %v149, %v198
    %v202 = vmul.f32 %v150, %v198
    %v203 = vmul.f32 %v151, %v198
    %v204 = vmul.f32 %v152, %v198
    %v205 = vmul.f32 %v153, %v198
    %v206 = vmul.f32 %v154, %v198
    %v207 = vmul.f32 %v155, %v198
    %v208 = vmul.f32 %v156, %v198
    %v209 = vmul.f32 %v157, %v198
    %v210 = vmul.f32 %v158, %v198
    %v211 = vmul.f32 %v159, %v198
    %v212 = vmul.f32 %v160, %v198
    %v213 = vmul.f32 %v161, %v198
    %v214 = vmul.f32 %v162, %v198
    %s215 = scalar_lea.vmem [#allocation5], 128
    %216 = vst [vmem:[%s215] sm:$0xff] %v199
    %217 = vst [vmem:[%s215 + $0x8] sm:$0xff] %v200
    %218 = vst [vmem:[%s215 + $0x10] sm:$0xff] %v201
    %219 = vst [vmem:[%s215 + $0x18] sm:$0xff] %v202
    %220 = vst [vmem:[%s215 + $0x20] sm:$0xff] %v203
    %221 = vst [vmem:[%s215 + $0x28] sm:$0xff] %v204
    %222 = vst [vmem:[%s215 + $0x30] sm:$0xff] %v205
    %223 = vst [vmem:[%s215 + $0x38] sm:$0xff] %v206
    %224 = vst [vmem:[%s215 + $0x40] sm:$0xff] %v207
    %225 = vst [vmem:[%s215 + $0x48] sm:$0xff] %v208
    %226 = vst [vmem:[%s215 + $0x50] sm:$0xff] %v209
    %227 = vst [vmem:[%s215 + $0x58] sm:$0xff] %v210
    %228 = vst [vmem:[%s215 + $0x60] sm:$0xff] %v211
    %229 = vst [vmem:[%s215 + $0x68] sm:$0xff] %v212
    %230 = vst [vmem:[%s215 + $0x70] sm:$0xff] %v213
    %231 = vst [vmem:[%s215 + $0x78] sm:$0xff] %v214
    %s232 = sld [smem:[#allocation2 + $0x2]]
    %v233 = vstv %s232
    %v234 = vmul.f32 %v147, %v233
    %v235 = vmul.f32 %v148, %v233
    %v236 = vmul.f32 %v149, %v233
    %v237 = vmul.f32 %v150, %v233
    %v238 = vmul.f32 %v151, %v233
    %v239 = vmul.f32 %v152, %v233
    %v240 = vmul.f32 %v153, %v233
    %v241 = vmul.f32 %v154, %v233
    %v242 = vmul.f32 %v155, %v233
    %v243 = vmul.f32 %v156, %v233
    %v244 = vmul.f32 %v157, %v233
    %v245 = vmul.f32 %v158, %v233
    %v246 = vmul.f32 %v159, %v233
    %v247 = vmul.f32 %v160, %v233
    %v248 = vmul.f32 %v161, %v233
    %v249 = vmul.f32 %v162, %v233
    %s250 = scalar_lea.vmem [#allocation5], 256
    %251 = vst [vmem:[%s250] sm:$0xff] %v234
    %252 = vst [vmem:[%s250 + $0x8] sm:$0xff] %v235
    %253 = vst [vmem:[%s250 + $0x10] sm:$0xff] %v236
    %254 = vst [vmem:[%s250 + $0x18] sm:$0xff] %v237
    %255 = vst [vmem:[%s250 + $0x20] sm:$0xff] %v238
    %256 = vst [vmem:[%s250 + $0x28] sm:$0xff] %v239
    %257 = vst [vmem:[%s250 + $0x30] sm:$0xff] %v240
    %258 = vst [vmem:[%s250 + $0x38] sm:$0xff] %v241
    %259 = vst [vmem:[%s250 + $0x40] sm:$0xff] %v242
    %260 = vst [vmem:[%s250 + $0x48] sm:$0xff] %v243
    %261 = vst [vmem:[%s250 + $0x50] sm:$0xff] %v244
    %262 = vst [vmem:[%s250 + $0x58] sm:$0xff] %v245
    %263 = vst [vmem:[%s250 + $0x60] sm:$0xff] %v246
    %264 = vst [vmem:[%s250 + $0x68] sm:$0xff] %v247
    %265 = vst [vmem:[%s250 + $0x70] sm:$0xff] %v248
    %266 = vst [vmem:[%s250 + $0x78] sm:$0xff] %v249
    %s267 = sld [smem:[#allocation2 + $0x3]]
    %v268 = vstv %s267
    %v269 = vmul.f32 %v147, %v268
    %v270 = vmul.f32 %v148, %v268
    %v271 = vmul.f32 %v149, %v268
    %v272 = vmul.f32 %v150, %v268
    %v273 = vmul.f32 %v151, %v268
    %v274 = vmul.f32 %v152, %v268
    %v275 = vmul.f32 %v153, %v268
    %v276 = vmul.f32 %v154, %v268
    %v277 = vmul.f32 %v155, %v268
    %v278 = vmul.f32 %v156, %v268
    %v279 = vmul.f32 %v157, %v268
    %v280 = vmul.f32 %v158, %v268
    %v281 = vmul.f32 %v159, %v268
    %v282 = vmul.f32 %v160, %v268
    %v283 = vmul.f32 %v161, %v268
    %v284 = vmul.f32 %v162, %v268
    %s285 = scalar_lea.vmem [#allocation5], 384
    %286 = vst [vmem:[%s285] sm:$0xff] %v269
    %287 = vst [vmem:[%s285 + $0x8] sm:$0xff] %v270
    %288 = vst [vmem:[%s285 + $0x10] sm:$0xff] %v271
    %289 = vst [vmem:[%s285 + $0x18] sm:$0xff] %v272
    %290 = vst [vmem:[%s285 + $0x20] sm:$0xff] %v273
    %291 = vst [vmem:[%s285 + $0x28] sm:$0xff] %v274
    %292 = vst [vmem:[%s285 + $0x30] sm:$0xff] %v275
    %293 = vst [vmem:[%s285 + $0x38] sm:$0xff] %v276
    %294 = vst [vmem:[%s285 + $0x40] sm:$0xff] %v277
    %295 = vst [vmem:[%s285 + $0x48] sm:$0xff] %v278
    %296 = vst [vmem:[%s285 + $0x50] sm:$0xff] %v279
    %297 = vst [vmem:[%s285 + $0x58] sm:$0xff] %v280
    %298 = vst [vmem:[%s285 + $0x60] sm:$0xff] %v281
    %299 = vst [vmem:[%s285 + $0x68] sm:$0xff] %v282
    %300 = vst [vmem:[%s285 + $0x70] sm:$0xff] %v283
    %301 = vst [vmem:[%s285 + $0x78] sm:$0xff] %v284
    // Predicated region
    $region18: #{tpu_custom_call.1} parent=1 // pred_check
      _
    $region19: #{tpu_custom_call.1} parent=1 // pred_check_branch
      %303 = sbr.rel (0) target = $region21
    $region20: #{tpu_custom_call.1} parent=1 // pred_region
      %s305 = ssub.s32 8192, 8192
      %306 = vsyncadd [#allocation3], %s305
      %s307 = sshll.u32 [#allocation5], 4
      %s308 = int_to_ptr.vmem [resolvable:$true] %s307
      %313 = dma.vmem_to_hbm [thread:$0]  %s308, 8192, %s3, [#allocation3], 128, 128, 8
    $region21: #{tpu_custom_call.1} parent=1 // pred_fallthru
      _
    // Predicated region
    $region22: #{tpu_custom_call.1} parent=1 // pred_check
      _
    $region23: #{tpu_custom_call.1} parent=1 // pred_check_branch
      %315 = sbr.rel (0) target = $region25
    $region24: #{tpu_custom_call.1} parent=1 // pred_region
      %316 = dma.done [#allocation3], 8192
    $region25: #{tpu_custom_call.1} parent=1 // pred_fallthru
      _
    %317 = vsyncpa [#allocation3], 1
    %318 = vsyncpa [#allocation4], 1

</llo_original>
